<compile_context>
chip_gen: v5e
topology: v5e:2x2
jax: 0.10.0
libtpu: 0.0.40
codegen_flags: <defaults>
</compile_context>

<pallas_src>
import jax
import jax.numpy as jnp
from jax.experimental import pallas as pl
from jax.experimental.pallas import tpu as pltpu


# ---------------------------------------------------------------------------
# Kernels
# ---------------------------------------------------------------------------
def _copy_kernel(x_ref, o_ref):
    # Pure VMEM tile copy (vld + vst; lane-dense tiles -> unmasked vst).
    o_ref[...] = x_ref[...]


def _dma_copy_kernel(x_hbm_ref, o_hbm_ref, sem):
    # Single HBM->HBM DMA.  The TensorCore only issues the descriptor and
    # waits; there is no compute to overlap, so this is strictly cheaper than
    # staging through VMEM.
    cp = pltpu.make_async_copy(x_hbm_ref, o_hbm_ref, sem)
    cp.start()
    cp.wait()


# ---------------------------------------------------------------------------
# Tiling heuristics (VMEM-pipelined path)
# ---------------------------------------------------------------------------
def _round_up(a: int, b: int) -> int:
    return ((a + b - 1) // b) * b


def _block_bytes_target() -> int:
    """Per-block byte target for the pipelined copy.

    Bigger blocks amortize the ~0.35 us per-grid-step overhead; that matters
    most on v7x (3.2 TB/s HBM => a 2 MiB block is only ~1.3 us of traffic).
    Default conservatively to 2 MiB, which v5e's 16 MiB scoped-VMEM default
    can double-buffer (2x in + 2x out = 8 MiB) without raising the limit.
    """
    try:
        info = pltpu.get_tpu_info()
        ver = str(getattr(info, "chip_version", "")).lower()
        if "7" in ver:
            return 8 << 20
        if "6" in ver:
            return 4 << 20
        if "5" in ver:
            return 2 << 20
    except Exception:  # best-effort hardware query
        pass
    return 2 << 20


def _pick_lane_width(total: int) -> int:
    """Largest lane width (multiple of 128, up to 1024) dividing `total`."""
    for cand in (1024, 512, 256, 128):
        if total % cand == 0:
            return cand
    return 0


def _pick_block_rows(rows: int, lane: int, itemsize: int, target_bytes: int) -> int:
    """Row-tile size: ~target_bytes per block, aligned to the dtype's native
    sublane tile, capped so the grid has >=2 steps when the input is big
    enough to split (v7x shards "parallel" grid axes across its 2 TCs)."""
    # Native second-minor tile: 8 rows for 32-bit, 16 for 16-bit, 32 for 8-bit
    # dtypes (sub-32-bit packs along sublanes -> keep stores unmasked).
    sub = max(8, 32 // max(1, itemsize))
    target = max(sub, ((target_bytes // (lane * itemsize)) // sub) * sub)
    if rows > sub:
        half = _round_up(pl.cdiv(rows, 2), sub)
        target = min(target, half)
    block = min(target, _round_up(rows, sub))
    if block > rows:
        block = rows  # full-extent block: exempt from the (8,128) rule
    return block


# ---------------------------------------------------------------------------
# Copy implementations
# ---------------------------------------------------------------------------
def _copy_dma(x: jax.Array, cost: pl.CostEstimate) -> jax.Array:
    return pl.pallas_call(
        _dma_copy_kernel,
        out_shape=jax.ShapeDtypeStruct(x.shape, x.dtype),
        in_specs=[pl.BlockSpec(memory_space=pl.ANY)],
        out_specs=pl.BlockSpec(memory_space=pl.ANY),
        scratch_shapes=[pltpu.SemaphoreType.DMA],
        compiler_params=pltpu.CompilerParams(has_side_effects=True),
        cost_estimate=cost,
    )(x)


def _copy_pipelined_2d(x2: jax.Array, rows: int, lane: int, itemsize: int,
                       cost: pl.CostEstimate) -> jax.Array:
    block_rows = _pick_block_rows(rows, lane, itemsize, _block_bytes_target())
    grid = (pl.cdiv(rows, block_rows),)
    block_bytes = block_rows * lane * itemsize
    # 2x in + 2x out double buffers must fit; 48 MiB cap leaves headroom under
    # v7x's 64 MiB physical VMEM and is well inside v5e/v6e's 128 MiB.
    vmem_limit = int(max(32 << 20, min(48 << 20, 8 * block_bytes)))

    return pl.pallas_call(
        _copy_kernel,
        out_shape=jax.ShapeDtypeStruct((rows, lane), x2.dtype),
        grid_spec=pltpu.PrefetchScalarGridSpec(
            num_scalar_prefetch=0,
            grid=grid,
            in_specs=[pl.BlockSpec((block_rows, lane), lambda i: (i, 0))],
            out_specs=pl.BlockSpec((block_rows, lane), lambda i: (i, 0)),
        ),
        compiler_params=pltpu.CompilerParams(
            dimension_semantics=("parallel",),
            vmem_limit_bytes=vmem_limit,
        ),
        cost_estimate=cost,
    )(x2)


def _copy_pipelined_flat(x: jax.Array, total: int,
                         cost: pl.CostEstimate) -> jax.Array:
    # Element count not a multiple of 128: copy through a (1, total) view with
    # lane-blocked tiles; Pallas masks the ragged last block.  (The
    # second-minor dim of 1 wastes sublanes in VMEM, so keep blocks modest.)
    x2 = x.reshape(1, total)
    block_lane = min(32 * 1024, _round_up(total, 128))
    if block_lane > total:
        block_lane = total  # single full-extent block
    grid = (pl.cdiv(total, block_lane),)
    y2 = pl.pallas_call(
        _copy_kernel,
        out_shape=jax.ShapeDtypeStruct((1, total), x.dtype),
        grid_spec=pltpu.PrefetchScalarGridSpec(
            num_scalar_prefetch=0,
            grid=grid,
            in_specs=[pl.BlockSpec((1, block_lane), lambda i: (0, i))],
            out_specs=pl.BlockSpec((1, block_lane), lambda i: (0, i)),
        ),
        compiler_params=pltpu.CompilerParams(
            dimension_semantics=("parallel",),
            vmem_limit_bytes=32 << 20,
        ),
        cost_estimate=cost,
    )(x2)
    return y2.reshape(x.shape)


# ---------------------------------------------------------------------------
# Public API
# ---------------------------------------------------------------------------
def none_embedding(x: jax.Array) -> jax.Array:
    """Forward pass of NoneEmbedding: identity.

    The module does no computation, so the fastest correct implementation is
    to return the input unchanged (zero HBM traffic, zero kernel launches).
    """
    return x


def none_embedding_copy(x: jax.Array, *, method: str = "dma") -> jax.Array:
    """Identity realized as a physical copy into a fresh output buffer.

    method="dma":  single HBM->HBM async copy (structural optimum).
    method="vmem": lane-dense BlockSpec-pipelined VMEM copy.
    Prefer `none_embedding` unless a distinct buffer is actually required.
    """
    if x.size == 0:
        return x
    total = int(x.size)
    itemsize = jnp.dtype(x.dtype).itemsize
    cost = pl.CostEstimate(
        flops=0, transcendentals=0, bytes_accessed=2 * total * itemsize
    )

    if method == "dma":
        return _copy_dma(x, cost)

    lane = _pick_lane_width(total)
    if lane == 0:
        return _copy_pipelined_flat(x, total, cost)
    rows = total // lane
    x2 = x.reshape(rows, lane)
    y2 = _copy_pipelined_2d(x2, rows, lane, itemsize, cost)
    return y2.reshape(x.shape)


# ---------------------------------------------------------------------------
# Self-test
# ---------------------------------------------------------------------------
if __name__ == "__main__":
    key = jax.random.PRNGKey(0)

    # Small NCHW input consistent with a typical embedding-module caller.
    x = jax.random.normal(key, (2, 4, 16, 16), dtype=jnp.float32)

    # 1) Recommended hot path: true identity — no kernel, no copy.
    y_fast = none_embedding(x)
    assert y_fast.shape == x.shape and y_fast.dtype == x.dtype
    assert bool(jnp.all(y_fast == x)), "identity output mismatch"

    # 2) HBM->HBM DMA copy (default physical-copy path).
    y_dma = none_embedding_copy(x, method="dma")
    jax.block_until_ready(y_dma)
    assert y_dma.shape == x.shape and y_dma.dtype == x.dtype
    assert bool(jnp.all(y_dma == x)), "dma copy mismatch"

    # 3) VMEM-pipelined lane-dense copy, aligned shape (no masked edges).
    y_vmem = none_embedding_copy(x, method="vmem")
    jax.block_until_ready(y_vmem)
    assert bool(jnp.all(y_vmem == x)), "vmem copy mismatch"

    # 4) VMEM-pipelined copy with a ragged row edge (rows % block_rows != 0).
    xb = jax.random.normal(jax.random.PRNGKey(1), (3, 5, 16, 16), jnp.float32)
    yb = none_embedding_copy(xb, method="vmem")
    jax.block_until_ready(yb)
    assert bool(jnp.all(yb == xb)), "ragged-row vmem copy mismatch"

    # 5) Fallback path: element count not a multiple of 128 (masked lane edge).
    xc = jax.random.normal(jax.random.PRNGKey(2), (33, 1000), jnp.float32)
    yc = none_embedding_copy(xc, method="vmem")
    jax.block_until_ready(yc)
    assert bool(jnp.all(yc == xc)), "flat-fallback vmem copy mismatch"

    print("KERNEL_OK")
</pallas_src>

<mosaic_0001>
module attributes {stable_mosaic.version = 11 : i64} {
  func.func @_dma_copy_kernel(%arg0: memref<2x4x16x16xf32, #tpu.memory_space<any>>, %arg1: memref<2x4x16x16xf32, #tpu.memory_space<any>>, %arg2: memref<!tpu.dma_semaphore, #tpu.memory_space<semaphore_mem>>) attributes {dimension_semantics = [], scalar_prefetch = 0 : i64, scratch_operands = 1 : i64, tpu.core_type = #tpu.core_type<tc>} {
    tpu.enqueue_dma source(%arg0 : memref<2x4x16x16xf32, #tpu.memory_space<any>>) target(%arg1 : memref<2x4x16x16xf32, #tpu.memory_space<any>>) target_semaphore(%arg2 : memref<!tpu.dma_semaphore, #tpu.memory_space<semaphore_mem>>)
    tpu.wait_dma2 semaphore(%arg2 : memref<!tpu.dma_semaphore, #tpu.memory_space<semaphore_mem>>) src(%arg0 : memref<2x4x16x16xf32, #tpu.memory_space<any>>) dst(%arg1 : memref<2x4x16x16xf32, #tpu.memory_space<any>>)
    return
  }
}

</mosaic_0001>

<llo_original>
// kernel: tpu_custom_call.1
$region0: #{tpu_custom_call.1}
  #allocation0 [shape = 'u32[]', space=smem, size = 0x4, offset = 0x4, fixed_abs, tag = 'smem constant byte address 0x4 - core index']
  #allocation1 [shape = 'u32[72,128]{1,0:T(1,128)}', space=vmem, size = 0x9000, scoped, tag = 'internal scratch']
  #allocation2 [shape = 's32[1]{0}', space=sflag, size = 0x4, scoped, tag = 'scratch operand']
  #allocation3 [shape = 's32[]', space=sflag, size = 0x4, offset = 0, fixed_abs, tag = 'sflag constant byte address 0x0 - dummy sync flag']
  #allocation4 [shape = 'u32[0]{0}', space=smem, size = 0, offset = 0, fixed_abs, tag = 'smem constant byte address 0x0 - null']
  %s0 = inlined_call_operand.hbm [shape: f32[2,4,16,16], index: 0, kind: input, shape index: {}]
  %s1 = inlined_call_operand.hbm [shape: f32[2,4,16,16], index: 1, kind: output, shape index: {}]
  %s2 = sld [smem:[#allocation0]]
  $region2: #{tpu_custom_call.1} parent=0
    _
  %s4 = ssub.s32 1, %s2
  %s5 = scalar_select 0, %s4, %s2
  %s7 = sshll.u32 1, 14
  %s8 = sxor.u32 4294967295, %s7
  %s10 = sshll.u32 %s0, 4
  %s11 = int_to_ptr.hbm [resolvable:$true] %s10
  %s12 = sshll.u32 %s1, 4
  %s13 = int_to_ptr.hbm [resolvable:$true] %s12
  %16 = dma.general %s11, 2048, %s13, [#allocation2], [#allocation3], [#allocation4], 0, 0
  %s17 = smul.u32 2, 4
  %s18 = smul.u32 %s17, 16
  %s19 = smul.u32 %s18, 1
  %s20 = sshll.u32 %s19, 4
  %21 = dma.done [#allocation2], %s20
  %22 = vsyncmov [#allocation2]
  %s23 = vpop.sfrf %22
  %p24 = scmp.eq.s32.totalorder %s23, 0
  %p25 = pneg %p24
  %27 = shalt.err (%p25)

</llo_original>
